<compile_context>
chip_gen: v7x
topology: tpu7x:2x2x1
jax: 0.10.0
libtpu: 0.0.40
codegen_flags: <defaults>
</compile_context>

<pallas_src>
import functools
import math

import jax
import jax.numpy as jnp
from jax import lax
from jax.experimental import pallas as pl
from jax.experimental.pallas import tpu as pltpu


# ---------------------------------------------------------------------------
# Kernel
# ---------------------------------------------------------------------------
def _make_pdc_kernel(mxu_dtype):
    """Fused depthwise-3x3 -> ReLU -> 1x1 conv -> residual add (one row tile)."""

    def kernel(xb_ref, xh_ref, wdw_ref, wpw_ref, out_ref):
        # xb_ref : (1, R, W+2, C)   body rows of the W-zero-padded input tile
        # xh_ref : (1, 2, W+2, C)   halo rows: [top (row -1), bottom (row R)]
        # wdw_ref: (3, 3, C)        depthwise 3x3 weights (channels-last, f32)
        # wpw_ref: (C, Cout)        pointwise 1x1 weights (pre-cast to mxu_dtype)
        # out_ref: (1, R, W, Cout)
        R, W, Cout = out_ref.shape[1], out_ref.shape[2], out_ref.shape[3]
        C = xb_ref.shape[-1]

        body = xb_ref[0]                                     # (R,   W+2, C)
        halo = xh_ref[0]                                     # (2,   W+2, C)
        # Stitch the (R+2)-row haloed tile once in VMEM (no overlapping HBM
        # reads any more — the halo array carries only 2 rows per tile).
        xt = jnp.concatenate([halo[0:1], body, halo[1:2]], axis=0)  # (R+2, W+2, C)

        # Hoist the three column-shifted slabs once (only 2 sublane
        # realignments instead of 9 unaligned window materializations).
        # TODO(synk): move the column shifts to the idle XLU with pltpu.roll,
        #             and keep bf16 slabs on v6e/v7x (bf16 VALU) for bf16 inputs.
        cols = [xt[:, kj:kj + W, :].astype(jnp.float32) for kj in range(3)]

        # Depthwise 3x3 (VPU): row shifts are free leading-dim slices.
        wdw = wdw_ref[...]                                   # (3, 3, C) f32
        acc = jnp.zeros((R, W, C), dtype=jnp.float32)
        for ki in range(3):
            for kj in range(3):
                acc = acc + cols[kj][ki:ki + R] * wdw[ki, kj]

        y = jnp.maximum(acc, 0.0)                            # ReLU

        # 1x1 conv == one large-M channel matmul on the MXU (f32 accumulation).
        # TODO(synk): for C/Cout < 128 the MXU runs at (C/128)*(Cout/128)
        #             occupancy; pad channels to 128 (or use a lane-dense
        #             C-on-sublane layout) for production widths.
        z = jnp.dot(y.reshape(R * W, C).astype(mxu_dtype), wpw_ref[...],
                    preferred_element_type=jnp.float32).reshape(R, W, Cout)

        # Residual add: the unpadded input is the centre window of this tile,
        # so it is NOT streamed from HBM a second time.
        z = z + cols[1][1:1 + R]

        # TODO(synk): for Cout < 128 this store is lane-masked; a W-on-lane /
        #             C-on-sublane layout would densify it (second-tier win).
        out_ref[0] = z.astype(out_ref.dtype)

    return kernel


# ---------------------------------------------------------------------------
# Tiling / VMEM planning (generation aware, padded-footprint aware)
# ---------------------------------------------------------------------------
def _round_up(n, m):
    return ((n + m - 1) // m) * m


def _vmem_capacity_bytes():
    try:
        return int(pltpu.get_tpu_info().vmem_capacity_bytes)
    except Exception:
        return 64 << 20            # conservative fallback (v7x per-core VMEM)


def _vmem_budget_bytes():
    # Leave roughly half the physical VMEM (plus headroom) to the compiler:
    # ~56 MiB on v5e/v6e (128 MiB), ~24 MiB on v7x (64 MiB).
    cap = _vmem_capacity_bytes()
    return max(cap // 2 - (8 << 20), 12 << 20)


def _tile_working_set_bytes(R, W, C, itemsize):
    """Lane/sublane-padded VMEM footprint of one grid step, incl. temporaries."""
    Cp = _round_up(C, 128)                   # lane padding
    Wp2 = _round_up(W + 2, 8)                # sublane padding (f32 tiling)
    Wp = _round_up(W, 8)
    body = R * Wp2 * Cp * itemsize
    halo = 2 * Wp2 * Cp * itemsize
    out = R * Wp * Cp * itemsize
    tmp = ((R + 2) * Wp2 * Cp * max(itemsize, 4)     # stitched haloed tile
           + 3 * (R + 2) * Wp * Cp * 4               # 3 column slabs (f32)
           + 2 * R * Wp * Cp * 4)                    # acc/relu + matmul out
    return 2 * (body + halo + out) + tmp             # 2x: double-buffered DMA


def _pick_tile_rows(H, W, C, itemsize, budget):
    cands = []
    for r in (1024, 768, 512, 384, 256, 192, 128, 96, 64, 48, 32, 24, 16, 8):
        if _tile_working_set_bytes(r, W, C, itemsize) <= budget:
            cands.append(min(r, H))
    if not cands:
        return max(1, min(8, H))

    # Minimise padded-row waste (wasted VPU work + wasted HBM output writes),
    # then the number of grid steps; ties go to the largest tile.
    def key(r):
        nt = -(-H // r)
        return (nt * r - H, nt)

    return min(sorted(set(cands), reverse=True), key=key)


# ---------------------------------------------------------------------------
# Wrappers
# ---------------------------------------------------------------------------
def pdc_block_forward_nhwc(x_nhwc, w_dw_33c, w_pw_cco, *,
                           tile_rows=None, mxu_dtype=jnp.bfloat16):
    """Core NHWC entry point (chained PDCBlocks should stay NHWC end-to-end).

    x_nhwc  : (N, H, W, C)
    w_dw_33c: (3, 3, C)      depthwise 3x3 weights (channels last)
    w_pw_cco: (C, Cout)      pointwise 1x1 weights
    """
    N, H, W, C = x_nhwc.shape
    Cout = w_pw_cco.shape[1]
    assert Cout == C, "stride=1 PDCBlock requires ouplane == inplane for residual"

    itemsize = jnp.dtype(x_nhwc.dtype).itemsize
    budget = _vmem_budget_bytes()
    if tile_rows is None:
        R = _pick_tile_rows(H, W, C, itemsize, budget)
    else:
        R = int(tile_rows)
    R = max(1, min(R, max(H, 1)))
    nt = -(-H // R)
    Hp = nt * R

    # Body rows: W zero-padded by 1, H zero-padded up to a tile multiple.
    # (Single relayout copy under jit; the overlapping-tile gather is gone.)
    xb = jnp.pad(x_nhwc, ((0, 0), (0, Hp - H), (1, 1), (0, 0)))     # (N, Hp, W+2, C)

    # Halo rows (2 per tile): row i*R-1 (top) and row (i+1)*R (bottom), zero
    # outside the valid image.  Only 2*nt rows -> negligible HBM traffic.
    ti = jnp.arange(nt)
    top_i, bot_i = ti * R - 1, ti * R + R
    top = jnp.where((top_i >= 0)[None, :, None, None],
                    xb[:, jnp.clip(top_i, 0, Hp - 1)], 0).astype(xb.dtype)
    bot = jnp.where((bot_i < H)[None, :, None, None],
                    xb[:, jnp.clip(bot_i, 0, Hp - 1)], 0).astype(xb.dtype)
    xh = jnp.stack([top, bot], axis=2).reshape(N, 2 * nt, W + 2, C)

    # Pre-cast weights on the host (no per-grid-step .astype in the kernel).
    w_dw = w_dw_33c.astype(jnp.float32)
    w_pw = w_pw_cco.astype(mxu_dtype)

    cap = _vmem_capacity_bytes()
    ws = _tile_working_set_bytes(R, W, C, itemsize)
    vmem_limit = int(max(min(ws + (8 << 20), cap - (16 << 20)), 16 << 20))

    kernel = _make_pdc_kernel(mxu_dtype)
    out_full = pl.pallas_call(
        kernel,
        out_shape=jax.ShapeDtypeStruct((N, Hp, W, Cout), x_nhwc.dtype),
        grid_spec=pltpu.PrefetchScalarGridSpec(
            num_scalar_prefetch=0,
            grid=(N, nt),
            in_specs=[
                pl.BlockSpec((1, R, W + 2, C), lambda b, i: (b, i, 0, 0)),
                pl.BlockSpec((1, 2, W + 2, C), lambda b, i: (b, i, 0, 0)),
                pl.BlockSpec((3, 3, C), lambda b, i: (0, 0, 0)),
                pl.BlockSpec((C, Cout), lambda b, i: (0, 0)),
            ],
            out_specs=pl.BlockSpec((1, R, W, Cout), lambda b, i: (b, i, 0, 0)),
        ),
        # No cross-step state -> both axes safely "parallel" (v7x megacore).
        # TODO(synk): if xprof shows the halo-tile DMA still exposed, add
        #             pipeline_mode=pl.Buffered(3) on the body spec (v5e/v6e).
        compiler_params=pltpu.CompilerParams(
            dimension_semantics=("parallel", "parallel"),
            vmem_limit_bytes=vmem_limit),
    )(xb, xh, w_dw, w_pw)

    return out_full[:, :H]                                          # (N, H, W, Cout)


def pdc_block_forward(x_nchw, w_dw_torch, w_pw_torch, *,
                      tile_rows=None, mxu_dtype=jnp.bfloat16):
    """NCHW wrapper matching the PyTorch module API.

    x_nchw: (N, C, H, W); w_dw_torch: (C,1,3,3); w_pw_torch: (Cout,C,1,1).
    """
    # TODO(synk): chained PDCBlocks should call pdc_block_forward_nhwc directly
    #             to avoid the two NCHW<->NHWC relayout copies per block.
    x = jnp.transpose(x_nchw, (0, 2, 3, 1))                         # NCHW -> NHWC
    w_dw = jnp.transpose(w_dw_torch[:, 0, :, :], (1, 2, 0))         # (3, 3, C)
    w_pw = jnp.transpose(w_pw_torch[:, :, 0, 0], (1, 0))            # (C, Cout)
    out = pdc_block_forward_nhwc(x, w_dw, w_pw,
                                 tile_rows=tile_rows, mxu_dtype=mxu_dtype)
    return jnp.transpose(out, (0, 3, 1, 2))                         # NHWC -> NCHW


# ---------------------------------------------------------------------------
# Reference & test
# ---------------------------------------------------------------------------
def reference_forward(x_nchw, w_dw_torch, w_pw_torch):
    """Pure-JAX reference matching torch F.conv2d semantics (NCHW)."""
    C = x_nchw.shape[1]
    y = lax.conv_general_dilated(
        x_nchw, w_dw_torch, window_strides=(1, 1), padding=((1, 1), (1, 1)),
        dimension_numbers=("NCHW", "OIHW", "NCHW"), feature_group_count=C)
    y = jnp.maximum(y, 0.0)
    y = lax.conv_general_dilated(
        y, w_pw_torch, window_strides=(1, 1), padding=((0, 0), (0, 0)),
        dimension_numbers=("NCHW", "OIHW", "NCHW"))
    return y + x_nchw


def kaiming_uniform(key, shape, fan_in, a=math.sqrt(5)):
    gain = math.sqrt(2.0 / (1.0 + a * a))
    bound = gain * math.sqrt(3.0 / fan_in)
    return jax.random.uniform(key, shape, jnp.float32, -bound, bound)


# TODO(synk): only the vanilla ("cv") pdc op (== F.conv2d) is implemented; the
#             cd/ad/rd difference variants only re-combine the 3x3 weights.
# TODO(synk): the stride>1 branch (MaxPool2d + 1x1 shortcut) is not implemented
#             (default stride=1 PDCBlock path only).


if __name__ == "__main__":
    N, C, H, W = 2, 4, 20, 16
    Cout = C  # inplane == ouplane (stride=1 PDCBlock)

    key = jax.random.PRNGKey(0)
    kx, kw1, kw2 = jax.random.split(key, 3)

    x = jax.random.normal(kx, (N, C, H, W), jnp.float32)
    # conv1: Conv2d(pdc, C, C, k=3, pad=1, groups=C, bias=False), fan_in=1*3*3
    w_dw = kaiming_uniform(kw1, (C, 1, 3, 3), fan_in=1 * 3 * 3)
    # conv2: nn.Conv2d(C, Cout, k=1, bias=False), fan_in = C*1*1
    w_pw = kaiming_uniform(kw2, (Cout, C, 1, 1), fan_in=C * 1 * 1)

    ref = reference_forward(x, w_dw, w_pw)

    # Exact-precision path (f32 MXU operands), forced small row tiles so the
    # multi-tile grid, halo stitching and ragged-H handling are all exercised.
    fwd_f32 = jax.jit(functools.partial(pdc_block_forward,
                                        tile_rows=8, mxu_dtype=jnp.float32))
    out_f32 = jax.block_until_ready(fwd_f32(x, w_dw, w_pw))
    assert out_f32.shape == ref.shape == (N, Cout, H, W)
    assert jnp.allclose(out_f32, ref, atol=1e-5, rtol=1e-5), "f32 mismatch vs reference"

    # Optimized path: generation-aware auto tile size + bf16 MXU operands.
    fwd_opt = jax.jit(pdc_block_forward)
    out_opt = jax.block_until_ready(fwd_opt(x, w_dw, w_pw))
    assert out_opt.shape == ref.shape
    assert jnp.allclose(out_opt, ref, atol=3e-2, rtol=3e-2), "bf16 mismatch vs reference"

    print("KERNEL_OK")
</pallas_src>

<mosaic_0001>
module attributes {stable_mosaic.version = 11 : i64} {
  func.func @kernel(%arg0: i32, %arg1: i32, %arg2: memref<1x8x18x4xf32, #tpu.memory_space<vmem>>, %arg3: memref<1x2x18x4xf32, #tpu.memory_space<vmem>>, %arg4: memref<3x3x4xf32, #tpu.memory_space<vmem>>, %arg5: memref<4x4xf32, #tpu.memory_space<vmem>>, %arg6: memref<1x8x16x4xf32, #tpu.memory_space<vmem>>) attributes {dimension_semantics = [#tpu.dimension_semantics<parallel>, #tpu.dimension_semantics<parallel>], iteration_bounds = array<i64: 2, 3>, scalar_prefetch = 0 : i64, scratch_operands = 0 : i64, tpu.core_type = #tpu.core_type<tc>, window_params = [{transform_indices = @transform_0, window_bounds = array<i64: 1, 8, 18, 4>}, {transform_indices = @transform_1, window_bounds = array<i64: 1, 2, 18, 4>}, {pipeline_mode = #tpu.pipeline_mode<synchronous>, transform_indices = @transform_2, window_bounds = array<i64: 3, 3, 4>}, {pipeline_mode = #tpu.pipeline_mode<synchronous>, transform_indices = @transform_3, window_bounds = array<i64: 4, 4>}, {transform_indices = @transform_4, window_bounds = array<i64: 1, 8, 16, 4>}]} {
    %c0 = arith.constant 0 : index
    %c0_0 = arith.constant 0 : index
    %c0_1 = arith.constant 0 : index
    %c0_2 = arith.constant 0 : index
    %0 = vector.load %arg2[%c0, %c0_0, %c0_1, %c0_2] : memref<1x8x18x4xf32, #tpu.memory_space<vmem>>, vector<1x8x18x4xf32>
    %1 = vector.shape_cast %0 : vector<1x8x18x4xf32> to vector<8x18x4xf32>
    %c0_3 = arith.constant 0 : index
    %c0_4 = arith.constant 0 : index
    %c0_5 = arith.constant 0 : index
    %c0_6 = arith.constant 0 : index
    %2 = vector.load %arg3[%c0_3, %c0_4, %c0_5, %c0_6] : memref<1x2x18x4xf32, #tpu.memory_space<vmem>>, vector<1x2x18x4xf32>
    %3 = vector.shape_cast %2 : vector<1x2x18x4xf32> to vector<2x18x4xf32>
    %4 = vector.extract_strided_slice %3 {offsets = [0, 0, 0], sizes = [1, 18, 4], strides = [1, 1, 1]} : vector<2x18x4xf32> to vector<1x18x4xf32>
    %5 = vector.extract_strided_slice %3 {offsets = [1, 0, 0], sizes = [1, 18, 4], strides = [1, 1, 1]} : vector<2x18x4xf32> to vector<1x18x4xf32>
    %6 = tpu.concatenate %4, %1, %5 in 0 : vector<1x18x4xf32>, vector<8x18x4xf32>, vector<1x18x4xf32> -> vector<10x18x4xf32>
    %7 = vector.extract_strided_slice %6 {offsets = [0, 0, 0], sizes = [10, 16, 4], strides = [1, 1, 1]} : vector<10x18x4xf32> to vector<10x16x4xf32>
    %8 = vector.extract_strided_slice %6 {offsets = [0, 1, 0], sizes = [10, 16, 4], strides = [1, 1, 1]} : vector<10x18x4xf32> to vector<10x16x4xf32>
    %9 = vector.extract_strided_slice %6 {offsets = [0, 2, 0], sizes = [10, 16, 4], strides = [1, 1, 1]} : vector<10x18x4xf32> to vector<10x16x4xf32>
    %c0_7 = arith.constant 0 : index
    %c0_8 = arith.constant 0 : index
    %c0_9 = arith.constant 0 : index
    %10 = vector.load %arg4[%c0_7, %c0_8, %c0_9] : memref<3x3x4xf32, #tpu.memory_space<vmem>>, vector<3x3x4xf32>
    %cst = arith.constant 0.000000e+00 : f32
    %11 = vector.broadcast %cst : f32 to vector<8x16x4xf32>
    %12 = vector.extract_strided_slice %7 {offsets = [0, 0, 0], sizes = [8, 16, 4], strides = [1, 1, 1]} : vector<10x16x4xf32> to vector<8x16x4xf32>
    %13 = vector.extract_strided_slice %10 {offsets = [0, 0, 0], sizes = [1, 1, 4], strides = [1, 1, 1]} : vector<3x3x4xf32> to vector<1x1x4xf32>
    %14 = vector.shape_cast %13 : vector<1x1x4xf32> to vector<4xf32>
    %15 = vector.shape_cast %14 : vector<4xf32> to vector<1x1x4xf32>
    %16 = vector.broadcast %15 : vector<1x1x4xf32> to vector<8x16x4xf32>
    %17 = arith.mulf %12, %16 : vector<8x16x4xf32>
    %18 = arith.addf %11, %17 : vector<8x16x4xf32>
    %19 = vector.extract_strided_slice %8 {offsets = [0, 0, 0], sizes = [8, 16, 4], strides = [1, 1, 1]} : vector<10x16x4xf32> to vector<8x16x4xf32>
    %20 = vector.extract_strided_slice %10 {offsets = [0, 1, 0], sizes = [1, 1, 4], strides = [1, 1, 1]} : vector<3x3x4xf32> to vector<1x1x4xf32>
    %21 = vector.shape_cast %20 : vector<1x1x4xf32> to vector<4xf32>
    %22 = vector.shape_cast %21 : vector<4xf32> to vector<1x1x4xf32>
    %23 = vector.broadcast %22 : vector<1x1x4xf32> to vector<8x16x4xf32>
    %24 = arith.mulf %19, %23 : vector<8x16x4xf32>
    %25 = arith.addf %18, %24 : vector<8x16x4xf32>
    %26 = vector.extract_strided_slice %9 {offsets = [0, 0, 0], sizes = [8, 16, 4], strides = [1, 1, 1]} : vector<10x16x4xf32> to vector<8x16x4xf32>
    %27 = vector.extract_strided_slice %10 {offsets = [0, 2, 0], sizes = [1, 1, 4], strides = [1, 1, 1]} : vector<3x3x4xf32> to vector<1x1x4xf32>
    %28 = vector.shape_cast %27 : vector<1x1x4xf32> to vector<4xf32>
    %29 = vector.shape_cast %28 : vector<4xf32> to vector<1x1x4xf32>
    %30 = vector.broadcast %29 : vector<1x1x4xf32> to vector<8x16x4xf32>
    %31 = arith.mulf %26, %30 : vector<8x16x4xf32>
    %32 = arith.addf %25, %31 : vector<8x16x4xf32>
    %33 = vector.extract_strided_slice %7 {offsets = [1, 0, 0], sizes = [8, 16, 4], strides = [1, 1, 1]} : vector<10x16x4xf32> to vector<8x16x4xf32>
    %34 = vector.extract_strided_slice %10 {offsets = [1, 0, 0], sizes = [1, 1, 4], strides = [1, 1, 1]} : vector<3x3x4xf32> to vector<1x1x4xf32>
    %35 = vector.shape_cast %34 : vector<1x1x4xf32> to vector<4xf32>
    %36 = vector.shape_cast %35 : vector<4xf32> to vector<1x1x4xf32>
    %37 = vector.broadcast %36 : vector<1x1x4xf32> to vector<8x16x4xf32>
    %38 = arith.mulf %33, %37 : vector<8x16x4xf32>
    %39 = arith.addf %32, %38 : vector<8x16x4xf32>
    %40 = vector.extract_strided_slice %8 {offsets = [1, 0, 0], sizes = [8, 16, 4], strides = [1, 1, 1]} : vector<10x16x4xf32> to vector<8x16x4xf32>
    %41 = vector.extract_strided_slice %10 {offsets = [1, 1, 0], sizes = [1, 1, 4], strides = [1, 1, 1]} : vector<3x3x4xf32> to vector<1x1x4xf32>
    %42 = vector.shape_cast %41 : vector<1x1x4xf32> to vector<4xf32>
    %43 = vector.shape_cast %42 : vector<4xf32> to vector<1x1x4xf32>
    %44 = vector.broadcast %43 : vector<1x1x4xf32> to vector<8x16x4xf32>
    %45 = arith.mulf %40, %44 : vector<8x16x4xf32>
    %46 = arith.addf %39, %45 : vector<8x16x4xf32>
    %47 = vector.extract_strided_slice %9 {offsets = [1, 0, 0], sizes = [8, 16, 4], strides = [1, 1, 1]} : vector<10x16x4xf32> to vector<8x16x4xf32>
    %48 = vector.extract_strided_slice %10 {offsets = [1, 2, 0], sizes = [1, 1, 4], strides = [1, 1, 1]} : vector<3x3x4xf32> to vector<1x1x4xf32>
    %49 = vector.shape_cast %48 : vector<1x1x4xf32> to vector<4xf32>
    %50 = vector.shape_cast %49 : vector<4xf32> to vector<1x1x4xf32>
    %51 = vector.broadcast %50 : vector<1x1x4xf32> to vector<8x16x4xf32>
    %52 = arith.mulf %47, %51 : vector<8x16x4xf32>
    %53 = arith.addf %46, %52 : vector<8x16x4xf32>
    %54 = vector.extract_strided_slice %7 {offsets = [2, 0, 0], sizes = [8, 16, 4], strides = [1, 1, 1]} : vector<10x16x4xf32> to vector<8x16x4xf32>
    %55 = vector.extract_strided_slice %10 {offsets = [2, 0, 0], sizes = [1, 1, 4], strides = [1, 1, 1]} : vector<3x3x4xf32> to vector<1x1x4xf32>
    %56 = vector.shape_cast %55 : vector<1x1x4xf32> to vector<4xf32>
    %57 = vector.shape_cast %56 : vector<4xf32> to vector<1x1x4xf32>
    %58 = vector.broadcast %57 : vector<1x1x4xf32> to vector<8x16x4xf32>
    %59 = arith.mulf %54, %58 : vector<8x16x4xf32>
    %60 = arith.addf %53, %59 : vector<8x16x4xf32>
    %61 = vector.extract_strided_slice %8 {offsets = [2, 0, 0], sizes = [8, 16, 4], strides = [1, 1, 1]} : vector<10x16x4xf32> to vector<8x16x4xf32>
    %62 = vector.extract_strided_slice %10 {offsets = [2, 1, 0], sizes = [1, 1, 4], strides = [1, 1, 1]} : vector<3x3x4xf32> to vector<1x1x4xf32>
    %63 = vector.shape_cast %62 : vector<1x1x4xf32> to vector<4xf32>
    %64 = vector.shape_cast %63 : vector<4xf32> to vector<1x1x4xf32>
    %65 = vector.broadcast %64 : vector<1x1x4xf32> to vector<8x16x4xf32>
    %66 = arith.mulf %61, %65 : vector<8x16x4xf32>
    %67 = arith.addf %60, %66 : vector<8x16x4xf32>
    %68 = vector.extract_strided_slice %9 {offsets = [2, 0, 0], sizes = [8, 16, 4], strides = [1, 1, 1]} : vector<10x16x4xf32> to vector<8x16x4xf32>
    %69 = vector.extract_strided_slice %10 {offsets = [2, 2, 0], sizes = [1, 1, 4], strides = [1, 1, 1]} : vector<3x3x4xf32> to vector<1x1x4xf32>
    %70 = vector.shape_cast %69 : vector<1x1x4xf32> to vector<4xf32>
    %71 = vector.shape_cast %70 : vector<4xf32> to vector<1x1x4xf32>
    %72 = vector.broadcast %71 : vector<1x1x4xf32> to vector<8x16x4xf32>
    %73 = arith.mulf %68, %72 : vector<8x16x4xf32>
    %74 = arith.addf %67, %73 : vector<8x16x4xf32>
    %cst_10 = arith.constant 0.000000e+00 : f32
    %75 = vector.broadcast %cst_10 : f32 to vector<8x16x4xf32>
    %76 = arith.maximumf %74, %75 : vector<8x16x4xf32>
    %77 = vector.shape_cast %76 : vector<8x16x4xf32> to vector<128x4xf32>
    %c0_11 = arith.constant 0 : index
    %c0_12 = arith.constant 0 : index
    %78 = vector.load %arg5[%c0_11, %c0_12] : memref<4x4xf32, #tpu.memory_space<vmem>>, vector<4x4xf32>
    %cst_13 = arith.constant dense<0.000000e+00> : vector<128x4xf32>
    %79 = tpu.matmul %77, %78, %cst_13 {dimension_numbers = #tpu.dot_dimension_numbers<[1], [0], [0], [1], [0, 0, 1, 1], [], []>} : vector<128x4xf32>, vector<4x4xf32>, vector<128x4xf32> -> vector<128x4xf32>
    %80 = vector.shape_cast %79 : vector<128x4xf32> to vector<8x16x4xf32>
    %81 = vector.extract_strided_slice %8 {offsets = [1, 0, 0], sizes = [8, 16, 4], strides = [1, 1, 1]} : vector<10x16x4xf32> to vector<8x16x4xf32>
    %82 = arith.addf %80, %81 : vector<8x16x4xf32>
    %c0_14 = arith.constant 0 : index
    %c0_15 = arith.constant 0 : index
    %c0_16 = arith.constant 0 : index
    %c0_17 = arith.constant 0 : index
    %83 = vector.load %arg6[%c0_14, %c0_15, %c0_16, %c0_17] : memref<1x8x16x4xf32, #tpu.memory_space<vmem>>, vector<1x8x16x4xf32>
    %84 = vector.shape_cast %83 : vector<1x8x16x4xf32> to vector<8x16x4xf32>
    %85 = vector.shape_cast %82 : vector<8x16x4xf32> to vector<1x8x16x4xf32>
    tpu.vector_store %arg6[%c0_14, %c0_15, %c0_16, %c0_17], %85 {strides = array<i32>} : memref<1x8x16x4xf32, #tpu.memory_space<vmem>>, vector<1x8x16x4xf32>,
    return
  }
  func.func @transform_0(%arg0: i32, %arg1: i32) -> (i32, i32, i32, i32) {
    %c0_i32 = arith.constant 0 : i32
    %c0_i32_0 = arith.constant 0 : i32
    %c0_i32_1 = arith.constant 0 : i32
    return %arg0, %arg1, %c0_i32, %c0_i32_0 : i32, i32, i32, i32
  }
  func.func @transform_1(%arg0: i32, %arg1: i32) -> (i32, i32, i32, i32) {
    %c0_i32 = arith.constant 0 : i32
    %c0_i32_0 = arith.constant 0 : i32
    %c0_i32_1 = arith.constant 0 : i32
    return %arg0, %arg1, %c0_i32, %c0_i32_0 : i32, i32, i32, i32
  }
  func.func @transform_2(%arg0: i32, %arg1: i32) -> (i32, i32, i32) {
    %c0_i32 = arith.constant 0 : i32
    %c0_i32_0 = arith.constant 0 : i32
    %c0_i32_1 = arith.constant 0 : i32
    %c0_i32_2 = arith.constant 0 : i32
    return %c0_i32, %c0_i32_0, %c0_i32_1 : i32, i32, i32
  }
  func.func @transform_3(%arg0: i32, %arg1: i32) -> (i32, i32) {
    %c0_i32 = arith.constant 0 : i32
    %c0_i32_0 = arith.constant 0 : i32
    %c0_i32_1 = arith.constant 0 : i32
    return %c0_i32, %c0_i32_0 : i32, i32
  }
  func.func @transform_4(%arg0: i32, %arg1: i32) -> (i32, i32, i32, i32) {
    %c0_i32 = arith.constant 0 : i32
    %c0_i32_0 = arith.constant 0 : i32
    %c0_i32_1 = arith.constant 0 : i32
    return %arg0, %arg1, %c0_i32, %c0_i32_0 : i32, i32, i32, i32
  }
}

</mosaic_0001>

<llo_original>
// kernel: pdc_block_forward.1
$region0: #{pdc_block_forward.1}
  #allocation0 [shape = 'u32[]', space=smem, size = 0x4, offset = 0x4, fixed_abs, tag = 'smem constant byte address 0x4 - core index']
  #allocation1 [shape = 'u32[144,128]{1,0:T(1,128)}', space=vmem, size = 0x12000, scoped, tag = 'internal scratch']
  %s0 = inlined_call_operand.vmem [shape: f32[2,24,18,4], index: 0, kind: input, shape index: {}]
  %s1 = inlined_call_operand.vmem [shape: f32[2,6,18,4], index: 1, kind: input, shape index: {}]
  %s2 = inlined_call_operand.vmem [shape: f32[3,3,4], index: 2, kind: input, shape index: {}]
  %s3 = inlined_call_operand.vmem [shape: f32[4,4], index: 3, kind: input, shape index: {}]
  %s4 = inlined_call_operand.vmem [shape: f32[2,24,16,4], index: 4, kind: output, shape index: {}]
  %s5 = sld [smem:[#allocation0]]
  $region49: #{pdc_block_forward.1} parent=0
    _
  %s7 = ssub.s32 1, %s5
  %s8 = scalar_select 0, %s7, %s5
  loop: start=0, step=1, limit=8
  $region2: #{pdc_block_forward.1} parent=0 // loop_pre_header
    _
  $region3: #{pdc_block_forward.1} parent=0 // loop_header
    %s10 = sphi 0, %s14
    %p11 = scmp.ge.s32.totalorder %s10, 8
    %s17 = sphi 0, %s29
    %s18 = sphi 0, %s25
    %s19 = sphi 0, %s17
    %s20 = sphi 0, %s18
    %s21 = sphi 0, %s19
    %s22 = sphi 0, %s20
    %s34 = sphi 0, %s36
    %s37 = sphi 0, %s34
    %s38 = sphi 0, %s37
    %s54 = sphi 0, %s38
    %s62 = sphi 0, %s64
    %s65 = sphi 0, %s62
    %s66 = sphi 0, %s65
    %s82 = sphi 0, %s66
    %s86 = sphi 0, %s86
    %s88 = sphi 0, %s86
    %s89 = sphi 0, %s88
    %s103 = sphi 0, %s89
    %s107 = sphi 0, %s107
    %s109 = sphi 0, %s107
    %s110 = sphi 0, %s109
    %s124 = sphi 0, %s110
    %s132 = sphi 0, %s134
    %s135 = sphi 0, %s132
    %s136 = sphi 0, %s135
    %s152 = sphi 0, %s136
  $region4: #{pdc_block_forward.1} parent=0 // loop_header_branch
    %13 = sbr.rel (%p11) target = $region8
  $region5: #{pdc_block_forward.1} parent=0 // loop_body
    %s15 = ssub.s32 %s10, 1
    %s16 = ssub.s32 %s10, 2
    %s23 = sadd.s32 1, %s18
    %p24 = scmp.ge.s32.totalorder %s23, 3
    %s25 = scalar_select %p24, 0, %s23
    %s26 = sadd.s32 1, %s17
    %s27 = scalar_select %p24, %s26, %s17
    %p28 = scmp.ge.s32.totalorder %s27, 2
    %s29 = scalar_select %p28, 0, %s27
    %s30 = ssub.s32 %s17, %s29
    %s31 = ssub.s32 %s18, %s25
    %s32 = sor.u32 %s30, %s31
    %p33 = scmp.eq.s32.totalorder %s32, 0
    %s35 = sadd.s32 %s34, 1
    %s36 = scalar_select %p33, %s34, %s35
    %p39 = pneg %p33
    %p40 = scmp.eq.s32.totalorder %s10, 5
    %p41 = por %p39, %p40
    %p42 = scmp.ne.s32.totalorder %s34, %s37
    %p43 = scmp.eq.s32.totalorder %s10, 0
    %p44 = por %p42, %p43
    %p45 = scmp.ne.s32.totalorder %s34, %s37
    %p46 = scmp.eq.s32.totalorder %s15, 5
    %p47 = por %p45, %p46
    %p48 = scmp.ne.s32.totalorder %s37, %s38
    %p49 = scmp.eq.s32.totalorder %s15, 0
    %p50 = por %p48, %p49
    %p51 = scmp.ne.s32.totalorder %s37, %s38
    %p52 = scmp.eq.s32.totalorder %s16, 5
    %p53 = por %p51, %p52
    %p55 = scmp.ne.s32.totalorder %s38, %s54
    %p56 = scmp.eq.s32.totalorder %s16, 0
    %p57 = por %p55, %p56
    %s58 = ssub.s32 %s17, %s29
    %s59 = ssub.s32 %s18, %s25
    %s60 = sor.u32 %s58, %s59
    %p61 = scmp.eq.s32.totalorder %s60, 0
    %s63 = sadd.s32 %s62, 1
    %s64 = scalar_select %p61, %s62, %s63
    %p67 = pneg %p61
    %p68 = scmp.eq.s32.totalorder %s10, 5
    %p69 = por %p67, %p68
    %p70 = scmp.ne.s32.totalorder %s62, %s65
    %p71 = scmp.eq.s32.totalorder %s10, 0
    %p72 = por %p70, %p71
    %p73 = scmp.ne.s32.totalorder %s62, %s65
    %p74 = scmp.eq.s32.totalorder %s15, 5
    %p75 = por %p73, %p74
    %p76 = scmp.ne.s32.totalorder %s65, %s66
    %p77 = scmp.eq.s32.totalorder %s15, 0
    %p78 = por %p76, %p77
    %p79 = scmp.ne.s32.totalorder %s65, %s66
    %p80 = scmp.eq.s32.totalorder %s16, 5
    %p81 = por %p79, %p80
    %p83 = scmp.ne.s32.totalorder %s66, %s82
    %p84 = scmp.eq.s32.totalorder %s16, 0
    %p85 = por %p83, %p84
    %s87 = sadd.s32 %s86, 1
    %p90 = scmp.eq.s32.totalorder %s10, 5
    %p91 = scmp.ne.s32.totalorder %s86, %s88
    %p92 = scmp.eq.s32.totalorder %s10, 0
    %p93 = por %p91, %p92
    %p94 = scmp.ne.s32.totalorder %s86, %s88
    %p95 = scmp.eq.s32.totalorder %s15, 5
    %p96 = por %p94, %p95
    %p97 = scmp.ne.s32.totalorder %s88, %s89
    %p98 = scmp.eq.s32.totalorder %s15, 0
    %p99 = por %p97, %p98
    %p100 = scmp.ne.s32.totalorder %s88, %s89
    %p101 = scmp.eq.s32.totalorder %s16, 5
    %p102 = por %p100, %p101
    %p104 = scmp.ne.s32.totalorder %s89, %s103
    %p105 = scmp.eq.s32.totalorder %s16, 0
    %p106 = por %p104, %p105
    %s108 = sadd.s32 %s107, 1
    %p111 = scmp.eq.s32.totalorder %s10, 5
    %p112 = scmp.ne.s32.totalorder %s107, %s109
    %p113 = scmp.eq.s32.totalorder %s10, 0
    %p114 = por %p112, %p113
    %p115 = scmp.ne.s32.totalorder %s107, %s109
    %p116 = scmp.eq.s32.totalorder %s15, 5
    %p117 = por %p115, %p116
    %p118 = scmp.ne.s32.totalorder %s109, %s110
    %p119 = scmp.eq.s32.totalorder %s15, 0
    %p120 = por %p118, %p119
    %p121 = scmp.ne.s32.totalorder %s109, %s110
    %p122 = scmp.eq.s32.totalorder %s16, 5
    %p123 = por %p121, %p122
    %p125 = scmp.ne.s32.totalorder %s110, %s124
    %p126 = scmp.eq.s32.totalorder %s16, 0
    %p127 = por %p125, %p126
    %s128 = ssub.s32 %s17, %s29
    %s129 = ssub.s32 %s18, %s25
    %s130 = sor.u32 %s128, %s129
    %p131 = scmp.eq.s32.totalorder %s130, 0
    %s133 = sadd.s32 %s132, 1
    %s134 = scalar_select %p131, %s132, %s133
    %p137 = pneg %p131
    %p138 = scmp.eq.s32.totalorder %s10, 5
    %p139 = por %p137, %p138
    %p140 = scmp.ne.s32.totalorder %s132, %s135
    %p141 = scmp.eq.s32.totalorder %s10, 0
    %p142 = por %p140, %p141
    %p143 = scmp.ne.s32.totalorder %s132, %s135
    %p144 = scmp.eq.s32.totalorder %s15, 5
    %p145 = por %p143, %p144
    %p146 = scmp.ne.s32.totalorder %s135, %s136
    %p147 = scmp.eq.s32.totalorder %s15, 0
    %p148 = por %p146, %p147
    %p149 = scmp.ne.s32.totalorder %s135, %s136
    %p150 = scmp.eq.s32.totalorder %s16, 5
    %p151 = por %p149, %p150
    %p153 = scmp.ne.s32.totalorder %s136, %s152
    %p154 = scmp.eq.s32.totalorder %s16, 0
    %p155 = por %p153, %p154
    %p156 = scmp.le.s32.totalorder 1, %s10
    %p157 = scmp.lt.s32.totalorder %s10, 7
    %p158 = pnand %p156, %p157
    %p159 = pneg %p158
    // Predicated region
    $region9: #{pdc_block_forward.1} parent=5 // pred_check
      _
    $region10: #{pdc_block_forward.1} parent=5 // pred_check_branch
      %161 = sbr.rel (%p158) target = $region12
    $region11: #{pdc_block_forward.1} parent=5 // pred_region
      %s162 = ssub.s32 %s10, 1
      // Predicated region
      $region13: #{pdc_block_forward.1} parent=11 // pred_check
        %p163 = pneg %p99
      $region14: #{pdc_block_forward.1} parent=11 // pred_check_branch
        %165 = sbr.rel (%p163) target = $region16
      $region15: #{pdc_block_forward.1} parent=11 // pred_region
        _
      $region16: #{pdc_block_forward.1} parent=11 // pred_fallthru
        _
      // Predicated region
      $region17: #{pdc_block_forward.1} parent=11 // pred_check
        %p166 = pneg %p120
      $region18: #{pdc_block_forward.1} parent=11 // pred_check_branch
        %168 = sbr.rel (%p166) target = $region20
      $region19: #{pdc_block_forward.1} parent=11 // pred_region
        _
      $region20: #{pdc_block_forward.1} parent=11 // pred_fallthru
        _
    $region12: #{pdc_block_forward.1} parent=5 // pred_fallthru
      _
    %p169 = scmp.lt.s32.totalorder %s10, 6
    // Predicated region
    $region21: #{pdc_block_forward.1} parent=5 // pred_check
      %p170 = pneg %p169
    $region22: #{pdc_block_forward.1} parent=5 // pred_check_branch
      %172 = sbr.rel (%p170) target = $region24
    $region23: #{pdc_block_forward.1} parent=5 // pred_region
      // Predicated region
      $region25: #{pdc_block_forward.1} parent=23 // pred_check
        %p173 = pneg %p44
      $region26: #{pdc_block_forward.1} parent=23 // pred_check_branch
        %175 = sbr.rel (%p173) target = $region28
      $region27: #{pdc_block_forward.1} parent=23 // pred_region
        %s176 = smul.u32 8, %s18
        %p177 = scmp.lt.s32.totalorder %s17, 1
        %s178 = scalar_select %p177, %s17, 1
        %p179 = scmp.lt.s32.totalorder %s176, 23
        %s180 = scalar_select %p179, %s176, 23
        %s181 = smul.addr %s180, 3
        %s182 = smul.addr %s178, 72
        %s183 = sadd.s32 %s181, %s182
        %s184 = smul.addr %s183, 8
        %s185 = scalar_lea.vmem %s0, %s184
        %s186 = smul.u32 8, %s18
      $region28: #{pdc_block_forward.1} parent=23 // pred_fallthru
        _
      // Predicated region
      $region29: #{pdc_block_forward.1} parent=23 // pred_check
        %p187 = pneg %p72
      $region30: #{pdc_block_forward.1} parent=23 // pred_check_branch
        %189 = sbr.rel (%p187) target = $region32
      $region31: #{pdc_block_forward.1} parent=23 // pred_region
        %s190 = smul.u32 2, %s18
        %p191 = scmp.lt.s32.totalorder %s17, 1
        %s192 = scalar_select %p191, %s17, 1
        %p193 = scmp.lt.s32.totalorder %s190, 5
        %s194 = scalar_select %p193, %s190, 5
        %s195 = smul.addr %s194, 3
        %s196 = smul.addr %s192, 18
        %s197 = sadd.s32 %s195, %s196
        %s198 = smul.addr %s197, 8
        %s199 = scalar_lea.vmem %s1, %s198
        %s200 = smul.u32 2, %s18
      $region32: #{pdc_block_forward.1} parent=23 // pred_fallthru
        _
    $region24: #{pdc_block_forward.1} parent=5 // pred_fallthru
      _
    %p201 = scmp.le.s32.totalorder 1, %s10
    %p202 = scmp.lt.s32.totalorder %s10, 7
    %p203 = pnand %p201, %p202
    %p204 = pneg %p203
    // Predicated region
    $region33: #{pdc_block_forward.1} parent=5 // pred_check
      _
    $region34: #{pdc_block_forward.1} parent=5 // pred_check_branch
      %206 = sbr.rel (%p203) target = $region36
    $region35: #{pdc_block_forward.1} parent=5 // pred_region
      %s207 = ssub.s32 %s10, 1
      %s208 = smul.u32 8, %s20
      %p209 = scmp.lt.s32.totalorder %s19, 1
      %s210 = scalar_select %p209, %s19, 1
      %p211 = scmp.lt.s32.totalorder %s208, 23
      %s212 = scalar_select %p211, %s208, 23
      %s213 = smul.addr %s212, 3
      %s214 = smul.addr %s210, 72
      %s215 = sadd.s32 %s213, %s214
      %s216 = smul.addr %s215, 8
      %s217 = scalar_lea.vmem %s0, %s216
      %p218 = pneg %p50
      %p219 = pneg %p47
      %s220 = smul.u32 2, %s20
      %p221 = scmp.lt.s32.totalorder %s19, 1
      %s222 = scalar_select %p221, %s19, 1
      %p223 = scmp.lt.s32.totalorder %s220, 5
      %s224 = scalar_select %p223, %s220, 5
      %s225 = smul.addr %s224, 3
      %s226 = smul.addr %s222, 18
      %s227 = sadd.s32 %s225, %s226
      %s228 = smul.addr %s227, 8
      %s229 = scalar_lea.vmem %s1, %s228
      %p230 = pneg %p78
      %p231 = pneg %p75
      %p232 = pneg %p99
      %p233 = pneg %p96
      %p234 = pneg %p120
      %p235 = pneg %p117
      %p236 = pneg %p148
      %p237 = pneg %p145
      %s238 = smul.u32 8, %s20
      %p239 = scmp.lt.s32.totalorder %s19, 1
      %s240 = scalar_select %p239, %s19, 1
      %p241 = scmp.lt.s32.totalorder %s238, 23
      %s242 = scalar_select %p241, %s238, 23
      %s243 = smul.addr %s242, 2
      %s244 = smul.addr %s240, 48
      %s245 = sadd.s32 %s243, %s244
      %s246 = smul.addr %s245, 8
      %s247 = scalar_lea.vmem %s4, %s246
      %s248 = smul.u32 8, %s20
      %p249 = scmp.lt.s32.totalorder %s19, 1
      %s250 = scalar_select %p249, %s19, 1
      %p251 = scmp.lt.s32.totalorder %s248, 23
      %s252 = scalar_select %p251, %s248, 23
      %s253 = smul.addr %s252, 3
      %s254 = smul.addr %s250, 72
      %s255 = sadd.s32 %s253, %s254
      %s256 = smul.addr %s255, 8
      %s257 = scalar_lea.vmem %s0, %s256
      %s258 = smul.u32 8, %s20
      %s259 = smul.u32 2, %s20
      %p260 = scmp.lt.s32.totalorder %s19, 1
      %s261 = scalar_select %p260, %s19, 1
      %p262 = scmp.lt.s32.totalorder %s259, 5
      %s263 = scalar_select %p262, %s259, 5
      %s264 = smul.addr %s263, 3
      %s265 = smul.addr %s261, 18
      %s266 = sadd.s32 %s264, %s265
      %s267 = smul.addr %s266, 8
      %s268 = scalar_lea.vmem %s1, %s267
      %s269 = smul.u32 2, %s20
      %s270 = smul.u32 8, %s20
      %p271 = scmp.lt.s32.totalorder %s19, 1
      %s272 = scalar_select %p271, %s19, 1
      %p273 = scmp.lt.s32.totalorder %s270, 23
      %s274 = scalar_select %p273, %s270, 23
      %s275 = smul.addr %s274, 2
      %s276 = smul.addr %s272, 48
      %s277 = sadd.s32 %s275, %s276
      %s278 = smul.addr %s277, 8
      %s279 = scalar_lea.vmem %s4, %s278
      %s280 = smul.u32 8, %s20
      %v281 = vld [vmem:[%s257] sm:$0xff]
      %v282 = vld [vmem:[%s257 + $0x8] sm:$0xff]
      %v283 = vld [vmem:[%s257 + $0x10] sm:$0x3]
      %v284 = vld [vmem:[%s257 + $0x18] sm:$0xff]
      %v285 = vld [vmem:[%s257 + $0x20] sm:$0xff]
      %v286 = vld [vmem:[%s257 + $0x28] sm:$0x3]
      %v287 = vld [vmem:[%s257 + $0x30] sm:$0xff]
      %v288 = vld [vmem:[%s257 + $0x38] sm:$0xff]
      %v289 = vld [vmem:[%s257 + $0x40] sm:$0x3]
      %v290 = vld [vmem:[%s257 + $0x48] sm:$0xff]
      %v291 = vld [vmem:[%s257 + $0x50] sm:$0xff]
      %v292 = vld [vmem:[%s257 + $0x58] sm:$0x3]
      %v293 = vld [vmem:[%s257 + $0x60] sm:$0xff]
      %v294 = vld [vmem:[%s257 + $0x68] sm:$0xff]
      %v295 = vld [vmem:[%s257 + $0x70] sm:$0x3]
      %v296 = vld [vmem:[%s257 + $0x78] sm:$0xff]
      %v297 = vld [vmem:[%s257 + $0x80] sm:$0xff]
      %v298 = vld [vmem:[%s257 + $0x88] sm:$0x3]
      %v299 = vld [vmem:[%s257 + $0x90] sm:$0xff]
      %v300 = vld [vmem:[%s257 + $0x98] sm:$0xff]
      %v301 = vld [vmem:[%s257 + $0xa0] sm:$0x3]
      %v302 = vld [vmem:[%s257 + $0xa8] sm:$0xff]
      %v303 = vld [vmem:[%s257 + $0xb0] sm:$0xff]
      %v304 = vld [vmem:[%s257 + $0xb8] sm:$0x3]
      %v305 = vld [vmem:[%s268] sm:$0xff]
      %v306 = vld [vmem:[%s268 + $0x8] sm:$0xff]
      %v307 = vld [vmem:[%s268 + $0x10] sm:$0x3]
      %v308 = vld [vmem:[%s268 + $0x18] sm:$0xff]
      %v309 = vld [vmem:[%s268 + $0x20] sm:$0xff]
      %v310 = vld [vmem:[%s268 + $0x28] sm:$0x3]
      %v311 = vld [vmem:[%s2] sm:$0x7]
      %v312 = vld [vmem:[%s2 + $0x4] sm:$0x7]
      %v313 = vld [vmem:[%s2 + $0x8] sm:$0x7]
      %v314 = vlaneseq
      %v315 = vshrl.u32 %v314, 7
      %v316 = vsub.s32 0, %v315
      %v317 = vrot.slane %v311, %v316
      %v318 = vmul.f32 %v305, %v317
      %v319 = vmul.f32 %v306, %v317
      %v320 = vmul.f32 %v281, %v317
      %v321 = vmul.f32 %v282, %v317
      %v322 = vmul.f32 %v284, %v317
      %v323 = vmul.f32 %v285, %v317
      %v324 = vmul.f32 %v287, %v317
      %v325 = vmul.f32 %v288, %v317
      %v326 = vmul.f32 %v290, %v317
      %v327 = vmul.f32 %v291, %v317
      %v328 = vmul.f32 %v293, %v317
      %v329 = vmul.f32 %v294, %v317
      %v330 = vmul.f32 %v296, %v317
      %v331 = vmul.f32 %v297, %v317
      %v332 = vmul.f32 %v299, %v317
      %v333 = vmul.f32 %v300, %v317
      %v334 = vadd.f32 %v318, 0.0
      %v335 = vadd.f32 %v319, 0.0
      %v336 = vadd.f32 %v320, 0.0
      %v337 = vadd.f32 %v321, 0.0
      %v338 = vadd.f32 %v322, 0.0
      %v339 = vadd.f32 %v323, 0.0
      %v340 = vadd.f32 %v324, 0.0
      %v341 = vadd.f32 %v325, 0.0
      %v342 = vadd.f32 %v326, 0.0
      %v343 = vadd.f32 %v327, 0.0
      %v344 = vadd.f32 %v328, 0.0
      %v345 = vadd.f32 %v329, 0.0
      %v346 = vadd.f32 %v330, 0.0
      %v347 = vadd.f32 %v331, 0.0
      %v348 = vadd.f32 %v332, 0.0
      %v349 = vadd.f32 %v333, 0.0
      %v350 = vlaneseq
      %v351 = vshrl.u32 %v350, 7
      %v352 = vsub.s32 1, %v351
      %v353 = vrot.slane %v311, %v352
      %v354 = vmul.f32 %v305, %v353
      %v355 = vmul.f32 %v306, %v353
      %v356 = vmul.f32 %v307, %v353
      %v357 = vmul.f32 %v281, %v353
      %v358 = vmul.f32 %v282, %v353
      %v359 = vmul.f32 %v283, %v353
      %v360 = vmul.f32 %v284, %v353
      %v361 = vmul.f32 %v285, %v353
      %v362 = vmul.f32 %v286, %v353
      %v363 = vmul.f32 %v287, %v353
      %v364 = vmul.f32 %v288, %v353
      %v365 = vmul.f32 %v289, %v353
      %v366 = vmul.f32 %v290, %v353
      %v367 = vmul.f32 %v291, %v353
      %v368 = vmul.f32 %v292, %v353
      %v369 = vmul.f32 %v293, %v353
      %v370 = vmul.f32 %v294, %v353
      %v371 = vmul.f32 %v295, %v353
      %v372 = vmul.f32 %v296, %v353
      %v373 = vmul.f32 %v297, %v353
      %v374 = vmul.f32 %v298, %v353
      %v375 = vmul.f32 %v299, %v353
      %v376 = vmul.f32 %v300, %v353
      %v377 = vmul.f32 %v301, %v353
      %vm402 = vcmask 1046528
      %v403 = vrot.slane %v354, 1
      %v404 = vrot.slane %v355, 1
      %v405 = vsel %vm402, %v403, %v404
      %v406 = vrot.slane %v356, 1
      %v407 = vsel %vm402, %v404, %v406
      %v408 = vrot.slane %v357, 1
      %v409 = vrot.slane %v358, 1
      %v410 = vsel %vm402, %v408, %v409
      %v411 = vrot.slane %v359, 1
      %v412 = vsel %vm402, %v409, %v411
      %v413 = vrot.slane %v360, 1
      %v414 = vrot.slane %v361, 1
      %v415 = vsel %vm402, %v413, %v414
      %v416 = vrot.slane %v362, 1
      %v417 = vsel %vm402, %v414, %v416
      %v418 = vrot.slane %v363, 1
      %v419 = vrot.slane %v364, 1
      %v420 = vsel %vm402, %v418, %v419
      %v421 = vrot.slane %v365, 1
      %v422 = vsel %vm402, %v419, %v421
      %v423 = vrot.slane %v366, 1
      %v424 = vrot.slane %v367, 1
      %v425 = vsel %vm402, %v423, %v424
      %v426 = vrot.slane %v368, 1
      %v427 = vsel %vm402, %v424, %v426
      %v428 = vrot.slane %v369, 1
      %v429 = vrot.slane %v370, 1
      %v430 = vsel %vm402, %v428, %v429
      %v431 = vrot.slane %v371, 1
      %v432 = vsel %vm402, %v429, %v431
      %v433 = vrot.slane %v372, 1
      %v434 = vrot.slane %v373, 1
      %v435 = vsel %vm402, %v433, %v434
      %v436 = vrot.slane %v374, 1
      %v437 = vsel %vm402, %v434, %v436
      %v438 = vrot.slane %v375, 1
      %v439 = vrot.slane %v376, 1
      %v440 = vsel %vm402, %v438, %v439
      %v441 = vrot.slane %v377, 1
      %v442 = vsel %vm402, %v439, %v441
      %v459 = vadd.f32 %v334, %v405
      %v460 = vadd.f32 %v335, %v407
      %v461 = vadd.f32 %v336, %v410
      %v462 = vadd.f32 %v337, %v412
      %v463 = vadd.f32 %v338, %v415
      %v464 = vadd.f32 %v339, %v417
      %v465 = vadd.f32 %v340, %v420
      %v466 = vadd.f32 %v341, %v422
      %v467 = vadd.f32 %v342, %v425
      %v468 = vadd.f32 %v343, %v427
      %v469 = vadd.f32 %v344, %v430
      %v470 = vadd.f32 %v345, %v432
      %v471 = vadd.f32 %v346, %v435
      %v472 = vadd.f32 %v347, %v437
      %v473 = vadd.f32 %v348, %v440
      %v474 = vadd.f32 %v349, %v442
      %v475 = vlaneseq
      %v476 = vshrl.u32 %v475, 7
      %v477 = vsub.s32 2, %v476
      %v478 = vrot.slane %v311, %v477
      %v479 = vmul.f32 %v305, %v478
      %v480 = vmul.f32 %v306, %v478
      %v481 = vmul.f32 %v307, %v478
      %v482 = vmul.f32 %v281, %v478
      %v483 = vmul.f32 %v282, %v478
      %v484 = vmul.f32 %v283, %v478
      %v485 = vmul.f32 %v284, %v478
      %v486 = vmul.f32 %v285, %v478
      %v487 = vmul.f32 %v286, %v478
      %v488 = vmul.f32 %v287, %v478
      %v489 = vmul.f32 %v288, %v478
      %v490 = vmul.f32 %v289, %v478
      %v491 = vmul.f32 %v290, %v478
      %v492 = vmul.f32 %v291, %v478
      %v493 = vmul.f32 %v292, %v478
      %v494 = vmul.f32 %v293, %v478
      %v495 = vmul.f32 %v294, %v478
      %v496 = vmul.f32 %v295, %v478
      %v497 = vmul.f32 %v296, %v478
      %v498 = vmul.f32 %v297, %v478
      %v499 = vmul.f32 %v298, %v478
      %v500 = vmul.f32 %v299, %v478
      %v501 = vmul.f32 %v300, %v478
      %v502 = vmul.f32 %v301, %v478
      %vm527 = vcmask 1045504
      %v528 = vrot.slane %v479, 2
      %v529 = vrot.slane %v480, 2
      %v530 = vsel %vm527, %v528, %v529
      %v531 = vrot.slane %v481, 2
      %v532 = vsel %vm527, %v529, %v531
      %v533 = vrot.slane %v482, 2
      %v534 = vrot.slane %v483, 2
      %v535 = vsel %vm527, %v533, %v534
      %v536 = vrot.slane %v484, 2
      %v537 = vsel %vm527, %v534, %v536
      %v538 = vrot.slane %v485, 2
      %v539 = vrot.slane %v486, 2
      %v540 = vsel %vm527, %v538, %v539
      %v541 = vrot.slane %v487, 2
      %v542 = vsel %vm527, %v539, %v541
      %v543 = vrot.slane %v488, 2
      %v544 = vrot.slane %v489, 2
      %v545 = vsel %vm527, %v543, %v544
      %v546 = vrot.slane %v490, 2
      %v547 = vsel %vm527, %v544, %v546
      %v548 = vrot.slane %v491, 2
      %v549 = vrot.slane %v492, 2
      %v550 = vsel %vm527, %v548, %v549
      %v551 = vrot.slane %v493, 2
      %v552 = vsel %vm527, %v549, %v551
      %v553 = vrot.slane %v494, 2
      %v554 = vrot.slane %v495, 2
      %v555 = vsel %vm527, %v553, %v554
      %v556 = vrot.slane %v496, 2
      %v557 = vsel %vm527, %v554, %v556
      %v558 = vrot.slane %v497, 2
      %v559 = vrot.slane %v498, 2
      %v560 = vsel %vm527, %v558, %v559
      %v561 = vrot.slane %v499, 2
      %v562 = vsel %vm527, %v559, %v561
      %v563 = vrot.slane %v500, 2
      %v564 = vrot.slane %v501, 2
      %v565 = vsel %vm527, %v563, %v564
      %v566 = vrot.slane %v502, 2
      %v567 = vsel %vm527, %v564, %v566
      %v584 = vadd.f32 %v459, %v530
      %v585 = vadd.f32 %v460, %v532
      %v586 = vadd.f32 %v461, %v535
      %v587 = vadd.f32 %v462, %v537
      %v588 = vadd.f32 %v463, %v540
      %v589 = vadd.f32 %v464, %v542
      %v590 = vadd.f32 %v465, %v545
      %v591 = vadd.f32 %v466, %v547
      %v592 = vadd.f32 %v467, %v550
      %v593 = vadd.f32 %v468, %v552
      %v594 = vadd.f32 %v469, %v555
      %v595 = vadd.f32 %v470, %v557
      %v596 = vadd.f32 %v471, %v560
      %v597 = vadd.f32 %v472, %v562
      %v598 = vadd.f32 %v473, %v565
      %v599 = vadd.f32 %v474, %v567
      %v600 = vlaneseq
      %v601 = vshrl.u32 %v600, 7
      %v602 = vsub.s32 0, %v601
      %v603 = vrot.slane %v312, %v602
      %v604 = vmul.f32 %v281, %v603
      %v605 = vmul.f32 %v282, %v603
      %v606 = vmul.f32 %v284, %v603
      %v607 = vmul.f32 %v285, %v603
      %v608 = vmul.f32 %v287, %v603
      %v609 = vmul.f32 %v288, %v603
      %v610 = vmul.f32 %v290, %v603
      %v611 = vmul.f32 %v291, %v603
      %v612 = vmul.f32 %v293, %v603
      %v613 = vmul.f32 %v294, %v603
      %v614 = vmul.f32 %v296, %v603
      %v615 = vmul.f32 %v297, %v603
      %v616 = vmul.f32 %v299, %v603
      %v617 = vmul.f32 %v300, %v603
      %v618 = vmul.f32 %v302, %v603
      %v619 = vmul.f32 %v303, %v603
      %v620 = vadd.f32 %v584, %v604
      %v621 = vadd.f32 %v585, %v605
      %v622 = vadd.f32 %v586, %v606
      %v623 = vadd.f32 %v587, %v607
      %v624 = vadd.f32 %v588, %v608
      %v625 = vadd.f32 %v589, %v609
      %v626 = vadd.f32 %v590, %v610
      %v627 = vadd.f32 %v591, %v611
      %v628 = vadd.f32 %v592, %v612
      %v629 = vadd.f32 %v593, %v613
      %v630 = vadd.f32 %v594, %v614
      %v631 = vadd.f32 %v595, %v615
      %v632 = vadd.f32 %v596, %v616
      %v633 = vadd.f32 %v597, %v617
      %v634 = vadd.f32 %v598, %v618
      %v635 = vadd.f32 %v599, %v619
      %v636 = vlaneseq
      %v637 = vshrl.u32 %v636, 7
      %v638 = vsub.s32 1, %v637
      %v639 = vrot.slane %v312, %v638
      %v640 = vmul.f32 %v281, %v639
      %v641 = vmul.f32 %v282, %v639
      %v642 = vmul.f32 %v283, %v639
      %v643 = vmul.f32 %v284, %v639
      %v644 = vmul.f32 %v285, %v639
      %v645 = vmul.f32 %v286, %v639
      %v646 = vmul.f32 %v287, %v639
      %v647 = vmul.f32 %v288, %v639
      %v648 = vmul.f32 %v289, %v639
      %v649 = vmul.f32 %v290, %v639
      %v650 = vmul.f32 %v291, %v639
      %v651 = vmul.f32 %v292, %v639
      %v652 = vmul.f32 %v293, %v639
      %v653 = vmul.f32 %v294, %v639
      %v654 = vmul.f32 %v295, %v639
      %v655 = vmul.f32 %v296, %v639
      %v656 = vmul.f32 %v297, %v639
      %v657 = vmul.f32 %v298, %v639
      %v658 = vmul.f32 %v299, %v639
      %v659 = vmul.f32 %v300, %v639
      %v660 = vmul.f32 %v301, %v639
      %v661 = vmul.f32 %v302, %v639
      %v662 = vmul.f32 %v303, %v639
      %v663 = vmul.f32 %v304, %v639
      %v688 = vrot.slane %v640, 1
      %v689 = vrot.slane %v641, 1
      %v690 = vsel %vm402, %v688, %v689
      %v691 = vrot.slane %v642, 1
      %v692 = vsel %vm402, %v689, %v691
      %v693 = vrot.slane %v643, 1
      %v694 = vrot.slane %v644, 1
      %v695 = vsel %vm402, %v693, %v694
      %v696 = vrot.slane %v645, 1
      %v697 = vsel %vm402, %v694, %v696
      %v698 = vrot.slane %v646, 1
      %v699 = vrot.slane %v647, 1
      %v700 = vsel %vm402, %v698, %v699
      %v701 = vrot.slane %v648, 1
      %v702 = vsel %vm402, %v699, %v701
      %v703 = vrot.slane %v649, 1
      %v704 = vrot.slane %v650, 1
      %v705 = vsel %vm402, %v703, %v704
      %v706 = vrot.slane %v651, 1
      %v707 = vsel %vm402, %v704, %v706
      %v708 = vrot.slane %v652, 1
      %v709 = vrot.slane %v653, 1
      %v710 = vsel %vm402, %v708, %v709
      %v711 = vrot.slane %v654, 1
      %v712 = vsel %vm402, %v709, %v711
      %v713 = vrot.slane %v655, 1
      %v714 = vrot.slane %v656, 1
      %v715 = vsel %vm402, %v713, %v714
      %v716 = vrot.slane %v657, 1
      %v717 = vsel %vm402, %v714, %v716
      %v718 = vrot.slane %v658, 1
      %v719 = vrot.slane %v659, 1
      %v720 = vsel %vm402, %v718, %v719
      %v721 = vrot.slane %v660, 1
      %v722 = vsel %vm402, %v719, %v721
      %v723 = vrot.slane %v661, 1
      %v724 = vrot.slane %v662, 1
      %v725 = vsel %vm402, %v723, %v724
      %v726 = vrot.slane %v663, 1
      %v727 = vsel %vm402, %v724, %v726
      %v744 = vadd.f32 %v620, %v690
      %v745 = vadd.f32 %v621, %v692
      %v746 = vadd.f32 %v622, %v695
      %v747 = vadd.f32 %v623, %v697
      %v748 = vadd.f32 %v624, %v700
      %v749 = vadd.f32 %v625, %v702
      %v750 = vadd.f32 %v626, %v705
      %v751 = vadd.f32 %v627, %v707
      %v752 = vadd.f32 %v628, %v710
      %v753 = vadd.f32 %v629, %v712
      %v754 = vadd.f32 %v630, %v715
      %v755 = vadd.f32 %v631, %v717
      %v756 = vadd.f32 %v632, %v720
      %v757 = vadd.f32 %v633, %v722
      %v758 = vadd.f32 %v634, %v725
      %v759 = vadd.f32 %v635, %v727
      %v760 = vlaneseq
      %v761 = vshrl.u32 %v760, 7
      %v762 = vsub.s32 2, %v761
      %v763 = vrot.slane %v312, %v762
      %v764 = vmul.f32 %v281, %v763
      %v765 = vmul.f32 %v282, %v763
      %v766 = vmul.f32 %v283, %v763
      %v767 = vmul.f32 %v284, %v763
      %v768 = vmul.f32 %v285, %v763
      %v769 = vmul.f32 %v286, %v763
      %v770 = vmul.f32 %v287, %v763
      %v771 = vmul.f32 %v288, %v763
      %v772 = vmul.f32 %v289, %v763
      %v773 = vmul.f32 %v290, %v763
      %v774 = vmul.f32 %v291, %v763
      %v775 = vmul.f32 %v292, %v763
      %v776 = vmul.f32 %v293, %v763
      %v777 = vmul.f32 %v294, %v763
      %v778 = vmul.f32 %v295, %v763
      %v779 = vmul.f32 %v296, %v763
      %v780 = vmul.f32 %v297, %v763
      %v781 = vmul.f32 %v298, %v763
      %v782 = vmul.f32 %v299, %v763
      %v783 = vmul.f32 %v300, %v763
      %v784 = vmul.f32 %v301, %v763
      %v785 = vmul.f32 %v302, %v763
      %v786 = vmul.f32 %v303, %v763
      %v787 = vmul.f32 %v304, %v763
      %v812 = vrot.slane %v764, 2
      %v813 = vrot.slane %v765, 2
      %v814 = vsel %vm527, %v812, %v813
      %v815 = vrot.slane %v766, 2
      %v816 = vsel %vm527, %v813, %v815
      %v817 = vrot.slane %v767, 2
      %v818 = vrot.slane %v768, 2
      %v819 = vsel %vm527, %v817, %v818
      %v820 = vrot.slane %v769, 2
      %v821 = vsel %vm527, %v818, %v820
      %v822 = vrot.slane %v770, 2
      %v823 = vrot.slane %v771, 2
      %v824 = vsel %vm527, %v822, %v823
      %v825 = vrot.slane %v772, 2
      %v826 = vsel %vm527, %v823, %v825
      %v827 = vrot.slane %v773, 2
      %v828 = vrot.slane %v774, 2
      %v829 = vsel %vm527, %v827, %v828
      %v830 = vrot.slane %v775, 2
      %v831 = vsel %vm527, %v828, %v830
      %v832 = vrot.slane %v776, 2
      %v833 = vrot.slane %v777, 2
      %v834 = vsel %vm527, %v832, %v833
      %v835 = vrot.slane %v778, 2
      %v836 = vsel %vm527, %v833, %v835
      %v837 = vrot.slane %v779, 2
      %v838 = vrot.slane %v780, 2
      %v839 = vsel %vm527, %v837, %v838
      %v840 = vrot.slane %v781, 2
      %v841 = vsel %vm527, %v838, %v840
      %v842 = vrot.slane %v782, 2
      %v843 = vrot.slane %v783, 2
      %v844 = vsel %vm527, %v842, %v843
      %v845 = vrot.slane %v784, 2
      %v846 = vsel %vm527, %v843, %v845
      %v847 = vrot.slane %v785, 2
      %v848 = vrot.slane %v786, 2
      %v849 = vsel %vm527, %v847, %v848
      %v850 = vrot.slane %v787, 2
      %v851 = vsel %vm527, %v848, %v850
      %v868 = vadd.f32 %v744, %v814
      %v869 = vadd.f32 %v745, %v816
      %v870 = vadd.f32 %v746, %v819
      %v871 = vadd.f32 %v747, %v821
      %v872 = vadd.f32 %v748, %v824
      %v873 = vadd.f32 %v749, %v826
      %v874 = vadd.f32 %v750, %v829
      %v875 = vadd.f32 %v751, %v831
      %v876 = vadd.f32 %v752, %v834
      %v877 = vadd.f32 %v753, %v836
      %v878 = vadd.f32 %v754, %v839
      %v879 = vadd.f32 %v755, %v841
      %v880 = vadd.f32 %v756, %v844
      %v881 = vadd.f32 %v757, %v846
      %v882 = vadd.f32 %v758, %v849
      %v883 = vadd.f32 %v759, %v851
      %v884 = vlaneseq
      %v885 = vshrl.u32 %v884, 7
      %v886 = vsub.s32 0, %v885
      %v887 = vrot.slane %v313, %v886
      %v888 = vmul.f32 %v284, %v887
      %v889 = vmul.f32 %v285, %v887
      %v890 = vmul.f32 %v287, %v887
      %v891 = vmul.f32 %v288, %v887
      %v892 = vmul.f32 %v290, %v887
      %v893 = vmul.f32 %v291, %v887
      %v894 = vmul.f32 %v293, %v887
      %v895 = vmul.f32 %v294, %v887
      %v896 = vmul.f32 %v296, %v887
      %v897 = vmul.f32 %v297, %v887
      %v898 = vmul.f32 %v299, %v887
      %v899 = vmul.f32 %v300, %v887
      %v900 = vmul.f32 %v302, %v887
      %v901 = vmul.f32 %v303, %v887
      %v902 = vmul.f32 %v308, %v887
      %v903 = vmul.f32 %v309, %v887
      %v904 = vadd.f32 %v868, %v888
      %v905 = vadd.f32 %v869, %v889
      %v906 = vadd.f32 %v870, %v890
      %v907 = vadd.f32 %v871, %v891
      %v908 = vadd.f32 %v872, %v892
      %v909 = vadd.f32 %v873, %v893
      %v910 = vadd.f32 %v874, %v894
      %v911 = vadd.f32 %v875, %v895
      %v912 = vadd.f32 %v876, %v896
      %v913 = vadd.f32 %v877, %v897
      %v914 = vadd.f32 %v878, %v898
      %v915 = vadd.f32 %v879, %v899
      %v916 = vadd.f32 %v880, %v900
      %v917 = vadd.f32 %v881, %v901
      %v918 = vadd.f32 %v882, %v902
      %v919 = vadd.f32 %v883, %v903
      %v920 = vlaneseq
      %v921 = vshrl.u32 %v920, 7
      %v922 = vsub.s32 1, %v921
      %v923 = vrot.slane %v313, %v922
      %v924 = vmul.f32 %v284, %v923
      %v925 = vmul.f32 %v285, %v923
      %v926 = vmul.f32 %v286, %v923
      %v927 = vmul.f32 %v287, %v923
      %v928 = vmul.f32 %v288, %v923
      %v929 = vmul.f32 %v289, %v923
      %v930 = vmul.f32 %v290, %v923
      %v931 = vmul.f32 %v291, %v923
      %v932 = vmul.f32 %v292, %v923
      %v933 = vmul.f32 %v293, %v923
      %v934 = vmul.f32 %v294, %v923
      %v935 = vmul.f32 %v295, %v923
      %v936 = vmul.f32 %v296, %v923
      %v937 = vmul.f32 %v297, %v923
      %v938 = vmul.f32 %v298, %v923
      %v939 = vmul.f32 %v299, %v923
      %v940 = vmul.f32 %v300, %v923
      %v941 = vmul.f32 %v301, %v923
      %v942 = vmul.f32 %v302, %v923
      %v943 = vmul.f32 %v303, %v923
      %v944 = vmul.f32 %v304, %v923
      %v945 = vmul.f32 %v308, %v923
      %v946 = vmul.f32 %v309, %v923
      %v947 = vmul.f32 %v310, %v923
      %v972 = vrot.slane %v924, 1
      %v973 = vrot.slane %v925, 1
      %v974 = vsel %vm402, %v972, %v973
      %v975 = vrot.slane %v926, 1
      %v976 = vsel %vm402, %v973, %v975
      %v977 = vrot.slane %v927, 1
      %v978 = vrot.slane %v928, 1
      %v979 = vsel %vm402, %v977, %v978
      %v980 = vrot.slane %v929, 1
      %v981 = vsel %vm402, %v978, %v980
      %v982 = vrot.slane %v930, 1
      %v983 = vrot.slane %v931, 1
      %v984 = vsel %vm402, %v982, %v983
      %v985 = vrot.slane %v932, 1
      %v986 = vsel %vm402, %v983, %v985
      %v987 = vrot.slane %v933, 1
      %v988 = vrot.slane %v934, 1
      %v989 = vsel %vm402, %v987, %v988
      %v990 = vrot.slane %v935, 1
      %v991 = vsel %vm402, %v988, %v990
      %v992 = vrot.slane %v936, 1
      %v993 = vrot.slane %v937, 1
      %v994 = vsel %vm402, %v992, %v993
      %v995 = vrot.slane %v938, 1
      %v996 = vsel %vm402, %v993, %v995
      %v997 = vrot.slane %v939, 1
      %v998 = vrot.slane %v940, 1
      %v999 = vsel %vm402, %v997, %v998
      %v1000 = vrot.slane %v941, 1
      %v1001 = vsel %vm402, %v998, %v1000
      %v1002 = vrot.slane %v942, 1
      %v1003 = vrot.slane %v943, 1
      %v1004 = vsel %vm402, %v1002, %v1003
      %v1005 = vrot.slane %v944, 1
      %v1006 = vsel %vm402, %v1003, %v1005
      %v1007 = vrot.slane %v945, 1
      %v1008 = vrot.slane %v946, 1
      %v1009 = vsel %vm402, %v1007, %v1008
      %v1010 = vrot.slane %v947, 1
      %v1011 = vsel %vm402, %v1008, %v1010
      %v1028 = vadd.f32 %v904, %v974
      %v1029 = vadd.f32 %v905, %v976
      %v1030 = vadd.f32 %v906, %v979
      %v1031 = vadd.f32 %v907, %v981
      %v1032 = vadd.f32 %v908, %v984
      %v1033 = vadd.f32 %v909, %v986
      %v1034 = vadd.f32 %v910, %v989
      %v1035 = vadd.f32 %v911, %v991
      %v1036 = vadd.f32 %v912, %v994
      %v1037 = vadd.f32 %v913, %v996
      %v1038 = vadd.f32 %v914, %v999
      %v1039 = vadd.f32 %v915, %v1001
      %v1040 = vadd.f32 %v916, %v1004
      %v1041 = vadd.f32 %v917, %v1006
      %v1042 = vadd.f32 %v918, %v1009
      %v1043 = vadd.f32 %v919, %v1011
      %v1044 = vlaneseq
      %v1045 = vshrl.u32 %v1044, 7
      %v1046 = vsub.s32 2, %v1045
      %v1047 = vrot.slane %v313, %v1046
      %v1048 = vmul.f32 %v284, %v1047
      %v1049 = vmul.f32 %v285, %v1047
      %v1050 = vmul.f32 %v286, %v1047
      %v1051 = vmul.f32 %v287, %v1047
      %v1052 = vmul.f32 %v288, %v1047
      %v1053 = vmul.f32 %v289, %v1047
      %v1054 = vmul.f32 %v290, %v1047
      %v1055 = vmul.f32 %v291, %v1047
      %v1056 = vmul.f32 %v292, %v1047
      %v1057 = vmul.f32 %v293, %v1047
      %v1058 = vmul.f32 %v294, %v1047
      %v1059 = vmul.f32 %v295, %v1047
      %v1060 = vmul.f32 %v296, %v1047
      %v1061 = vmul.f32 %v297, %v1047
      %v1062 = vmul.f32 %v298, %v1047
      %v1063 = vmul.f32 %v299, %v1047
      %v1064 = vmul.f32 %v300, %v1047
      %v1065 = vmul.f32 %v301, %v1047
      %v1066 = vmul.f32 %v302, %v1047
      %v1067 = vmul.f32 %v303, %v1047
      %v1068 = vmul.f32 %v304, %v1047
      %v1069 = vmul.f32 %v308, %v1047
      %v1070 = vmul.f32 %v309, %v1047
      %v1071 = vmul.f32 %v310, %v1047
      %v1096 = vrot.slane %v1048, 2
      %v1097 = vrot.slane %v1049, 2
      %v1098 = vsel %vm527, %v1096, %v1097
      %v1099 = vrot.slane %v1050, 2
      %v1100 = vsel %vm527, %v1097, %v1099
      %v1101 = vrot.slane %v1051, 2
      %v1102 = vrot.slane %v1052, 2
      %v1103 = vsel %vm527, %v1101, %v1102
      %v1104 = vrot.slane %v1053, 2
      %v1105 = vsel %vm527, %v1102, %v1104
      %v1106 = vrot.slane %v1054, 2
      %v1107 = vrot.slane %v1055, 2
      %v1108 = vsel %vm527, %v1106, %v1107
      %v1109 = vrot.slane %v1056, 2
      %v1110 = vsel %vm527, %v1107, %v1109
      %v1111 = vrot.slane %v1057, 2
      %v1112 = vrot.slane %v1058, 2
      %v1113 = vsel %vm527, %v1111, %v1112
      %v1114 = vrot.slane %v1059, 2
      %v1115 = vsel %vm527, %v1112, %v1114
      %v1116 = vrot.slane %v1060, 2
      %v1117 = vrot.slane %v1061, 2
      %v1118 = vsel %vm527, %v1116, %v1117
      %v1119 = vrot.slane %v1062, 2
      %v1120 = vsel %vm527, %v1117, %v1119
      %v1121 = vrot.slane %v1063, 2
      %v1122 = vrot.slane %v1064, 2
      %v1123 = vsel %vm527, %v1121, %v1122
      %v1124 = vrot.slane %v1065, 2
      %v1125 = vsel %vm527, %v1122, %v1124
      %v1126 = vrot.slane %v1066, 2
      %v1127 = vrot.slane %v1067, 2
      %v1128 = vsel %vm527, %v1126, %v1127
      %v1129 = vrot.slane %v1068, 2
      %v1130 = vsel %vm527, %v1127, %v1129
      %v1131 = vrot.slane %v1069, 2
      %v1132 = vrot.slane %v1070, 2
      %v1133 = vsel %vm527, %v1131, %v1132
      %v1134 = vrot.slane %v1071, 2
      %v1135 = vsel %vm527, %v1132, %v1134
      %v1152 = vadd.f32 %v1028, %v1098
      %v1153 = vadd.f32 %v1029, %v1100
      %v1154 = vadd.f32 %v1030, %v1103
      %v1155 = vadd.f32 %v1031, %v1105
      %v1156 = vadd.f32 %v1032, %v1108
      %v1157 = vadd.f32 %v1033, %v1110
      %v1158 = vadd.f32 %v1034, %v1113
      %v1159 = vadd.f32 %v1035, %v1115
      %v1160 = vadd.f32 %v1036, %v1118
      %v1161 = vadd.f32 %v1037, %v1120
      %v1162 = vadd.f32 %v1038, %v1123
      %v1163 = vadd.f32 %v1039, %v1125
      %v1164 = vadd.f32 %v1040, %v1128
      %v1165 = vadd.f32 %v1041, %v1130
      %v1166 = vadd.f32 %v1042, %v1133
      %v1167 = vadd.f32 %v1043, %v1135
      %v1168 = vmax.f32 %v1152, 0.0
      %v1169 = vmax.f32 %v1153, 0.0
      %v1170 = vmax.f32 %v1154, 0.0
      %v1171 = vmax.f32 %v1155, 0.0
      %v1172 = vmax.f32 %v1156, 0.0
      %v1173 = vmax.f32 %v1157, 0.0
      %v1174 = vmax.f32 %v1158, 0.0
      %v1175 = vmax.f32 %v1159, 0.0
      %v1176 = vmax.f32 %v1160, 0.0
      %v1177 = vmax.f32 %v1161, 0.0
      %v1178 = vmax.f32 %v1162, 0.0
      %v1179 = vmax.f32 %v1163, 0.0
      %v1180 = vmax.f32 %v1164, 0.0
      %v1181 = vmax.f32 %v1165, 0.0
      %v1182 = vmax.f32 %v1166, 0.0
      %v1183 = vmax.f32 %v1167, 0.0
      %v1184 = vld [vmem:[%s3] sm:$0xf]
      %vm1185 = vcmask 31744
      %v1187 = vsel %vm1185, %v1168, 0
      %v1190 = vsel %vm1185, %v1169, 0
      %v1193 = vsel %vm1185, %v1170, 0
      %v1196 = vsel %vm1185, %v1171, 0
      %v1199 = vsel %vm1185, %v1172, 0
      %v1202 = vsel %vm1185, %v1173, 0
      %v1205 = vsel %vm1185, %v1174, 0
      %v1208 = vsel %vm1185, %v1175, 0
      %v1211 = vsel %vm1185, %v1176, 0
      %v1214 = vsel %vm1185, %v1177, 0
      %v1217 = vsel %vm1185, %v1178, 0
      %v1220 = vsel %vm1185, %v1179, 0
      %v1223 = vsel %vm1185, %v1180, 0
      %v1226 = vsel %vm1185, %v1181, 0
      %v1229 = vsel %vm1185, %v1182, 0
      %v1232 = vsel %vm1185, %v1183, 0
      %vm1234 = vcmask 1043456
      %v1236 = vsel %vm1234, %v1184, 0
      %1238 = vmatprep.subr.mxu0 0.0
      %1239 = vmatpush1.msra.mxu0 %v1236
      %1240 = vmatprep.subr.mxu0 0.0
      %1241 = vmatpush1.msra.mxu0 0.0
      %1242 = vmatprep.subr.mxu0 0.0
      %1243 = vmatpush1.msra.mxu0 0.0
      %1244 = vmatprep.subr.mxu0 0.0
      %1245 = vmatpush1.msra.mxu0 0.0
      %1246 = vmatprep.subr.mxu0 0.0
      %1247 = vmatpush1.msra.mxu0 0.0
      %1248 = vmatprep.subr.mxu0 0.0
      %1249 = vmatpush1.msra.mxu0 0.0
      %1250 = vmatprep.subr.mxu0 0.0
      %1251 = vmatpush1.msra.mxu0 0.0
      %1252 = vmatprep.subr.mxu0 0.0
      %1253 = vmatpush1.msra.mxu0 0.0
      %1254 = vmatprep.subr.mxu0 0.0
      %1255 = vmatpush1.msra.mxu0 0.0
      %1256 = vmatprep.subr.mxu0 0.0
      %1257 = vmatpush1.msra.mxu0 0.0
      %1258 = vmatprep.subr.mxu0 0.0
      %1259 = vmatpush1.msra.mxu0 0.0
      %1260 = vmatprep.subr.mxu0 0.0
      %1261 = vmatpush1.msra.mxu0 0.0
      %1262 = vmatprep.subr.mxu0 0.0
      %1263 = vmatpush1.msra.mxu0 0.0
      %1264 = vmatprep.subr.mxu0 0.0
      %1265 = vmatpush1.msra.mxu0 0.0
      %1266 = vmatprep.subr.mxu0 0.0
      %1267 = vmatpush1.msra.mxu0 0.0
      %1268 = vmatprep.subr.mxu0 0.0
      %1269 = vmatpush1.msra.mxu0 0.0
      %1270 = vmatprep.subr.mxu0 0.0
      %1271 = vmatpush1.msra.mxu0 0.0
      %1272 = vmatprep.subr.mxu0 0.0
      %1273 = vmatpush1.msra.mxu0 0.0
      %1274 = vmatprep.subr.mxu0 0.0
      %1275 = vmatpush1.msra.mxu0 0.0
      %1276 = vmatprep.subr.mxu0 0.0
      %1277 = vmatpush1.msra.mxu0 0.0
      %1278 = vmatprep.subr.mxu0 0.0
      %1279 = vmatpush1.msra.mxu0 0.0
      %1280 = vmatprep.subr.mxu0 0.0
      %1281 = vmatpush1.msra.mxu0 0.0
      %1282 = vmatprep.subr.mxu0 0.0
      %1283 = vmatpush1.msra.mxu0 0.0
      %1284 = vmatprep.subr.mxu0 0.0
      %1285 = vmatpush1.msra.mxu0 0.0
      %1286 = vmatprep.subr.mxu0 0.0
      %1287 = vmatpush1.msra.mxu0 0.0
      %1288 = vmatprep.subr.mxu0 0.0
      %1289 = vmatpush1.msra.mxu0 0.0
      %1290 = vmatprep.subr.mxu0 0.0
      %1291 = vmatpush1.msra.mxu0 0.0
      %1292 = vmatprep.subr.mxu0 0.0
      %1293 = vmatpush1.msra.mxu0 0.0
      %1294 = vmatprep.subr.mxu0 0.0
      %1295 = vmatpush1.msra.mxu0 0.0
      %1296 = vmatprep.subr.mxu0 0.0
      %1297 = vmatpush1.msra.mxu0 0.0
      %1298 = vmatprep.subr.mxu0 0.0
      %1299 = vmatpush1.msra.mxu0 0.0
      %1300 = vmatprep.subr.mxu0 0.0
      %1301 = vmatpush1.msra.mxu0 0.0
      %1302 = vmatprep.mubr.f32.mxu0 0.0
      %1303 = vmatmul.mubr.f32.gmra.mrb[0].mxu0 %v1187
      %v1304 = vpop.f32.mrb[0].mxu0
      %v1305 = vadd.f32 0.0, %v1304
      %v1306 = vpop.f32.mrb[0].mxu0
      %1307 = vmatprep.mubr.f32.mxu0 0.0
      %1308 = vmatmul.mubr.f32.gmra.mrb[0].mxu0 %v1190
      %v1309 = vpop.f32.mrb[0].mxu0
      %v1310 = vadd.f32 0.0, %v1309
      %v1311 = vpop.f32.mrb[0].mxu0
      %1312 = vmatprep.mubr.f32.mxu0 0.0
      %1313 = vmatmul.mubr.f32.gmra.mrb[0].mxu0 %v1193
      %v1314 = vpop.f32.mrb[0].mxu0
      %v1315 = vadd.f32 0.0, %v1314
      %v1316 = vpop.f32.mrb[0].mxu0
      %1317 = vmatprep.mubr.f32.mxu0 0.0
      %1318 = vmatmul.mubr.f32.gmra.mrb[0].mxu0 %v1196
      %v1319 = vpop.f32.mrb[0].mxu0
      %v1320 = vadd.f32 0.0, %v1319
      %v1321 = vpop.f32.mrb[0].mxu0
      %1322 = vmatprep.mubr.f32.mxu0 0.0
      %1323 = vmatmul.mubr.f32.gmra.mrb[0].mxu0 %v1199
      %v1324 = vpop.f32.mrb[0].mxu0
      %v1325 = vadd.f32 0.0, %v1324
      %v1326 = vpop.f32.mrb[0].mxu0
      %1327 = vmatprep.mubr.f32.mxu0 0.0
      %1328 = vmatmul.mubr.f32.gmra.mrb[0].mxu0 %v1202
      %v1329 = vpop.f32.mrb[0].mxu0
      %v1330 = vadd.f32 0.0, %v1329
      %v1331 = vpop.f32.mrb[0].mxu0
      %1332 = vmatprep.mubr.f32.mxu0 0.0
      %1333 = vmatmul.mubr.f32.gmra.mrb[0].mxu0 %v1205
      %v1334 = vpop.f32.mrb[0].mxu0
      %v1335 = vadd.f32 0.0, %v1334
      %v1336 = vpop.f32.mrb[0].mxu0
      %1337 = vmatprep.mubr.f32.mxu0 0.0
      %1338 = vmatmul.mubr.f32.gmra.mrb[0].mxu0 %v1208
      %v1339 = vpop.f32.mrb[0].mxu0
      %v1340 = vadd.f32 0.0, %v1339
      %v1341 = vpop.f32.mrb[0].mxu0
      %1342 = vmatprep.mubr.f32.mxu0 0.0
      %1343 = vmatmul.mubr.f32.gmra.mrb[0].mxu0 %v1211
      %v1344 = vpop.f32.mrb[0].mxu0
      %v1345 = vadd.f32 0.0, %v1344
      %v1346 = vpop.f32.mrb[0].mxu0
      %1347 = vmatprep.mubr.f32.mxu0 0.0
      %1348 = vmatmul.mubr.f32.gmra.mrb[0].mxu0 %v1214
      %v1349 = vpop.f32.mrb[0].mxu0
      %v1350 = vadd.f32 0.0, %v1349
      %v1351 = vpop.f32.mrb[0].mxu0
      %1352 = vmatprep.mubr.f32.mxu0 0.0
      %1353 = vmatmul.mubr.f32.gmra.mrb[0].mxu0 %v1217
      %v1354 = vpop.f32.mrb[0].mxu0
      %v1355 = vadd.f32 0.0, %v1354
      %v1356 = vpop.f32.mrb[0].mxu0
      %1357 = vmatprep.mubr.f32.mxu0 0.0
      %1358 = vmatmul.mubr.f32.gmra.mrb[0].mxu0 %v1220
      %v1359 = vpop.f32.mrb[0].mxu0
      %v1360 = vadd.f32 0.0, %v1359
      %v1361 = vpop.f32.mrb[0].mxu0
      %1362 = vmatprep.mubr.f32.mxu0 0.0
      %1363 = vmatmul.mubr.f32.gmra.mrb[0].mxu0 %v1223
      %v1364 = vpop.f32.mrb[0].mxu0
      %v1365 = vadd.f32 0.0, %v1364
      %v1366 = vpop.f32.mrb[0].mxu0
      %1367 = vmatprep.mubr.f32.mxu0 0.0
      %1368 = vmatmul.mubr.f32.gmra.mrb[0].mxu0 %v1226
      %v1369 = vpop.f32.mrb[0].mxu0
      %v1370 = vadd.f32 0.0, %v1369
      %v1371 = vpop.f32.mrb[0].mxu0
      %1372 = vmatprep.mubr.f32.mxu0 0.0
      %1373 = vmatmul.mubr.f32.gmra.mrb[0].mxu0 %v1229
      %v1374 = vpop.f32.mrb[0].mxu0
      %v1375 = vadd.f32 0.0, %v1374
      %v1376 = vpop.f32.mrb[0].mxu0
      %1377 = vmatprep.mubr.f32.mxu0 0.0
      %1378 = vmatmul.mubr.f32.gmra.mrb[0].mxu0 %v1232
      %v1379 = vpop.f32.mrb[0].mxu0
      %v1380 = vadd.f32 0.0, %v1379
      %v1381 = vpop.f32.mrb[0].mxu0
      %1382 = vdwg.mxu0
      %v1407 = vrot.slane %v281, 1
      %v1408 = vrot.slane %v282, 1
      %v1409 = vsel %vm402, %v1407, %v1408
      %v1410 = vrot.slane %v283, 1
      %v1411 = vsel %vm402, %v1408, %v1410
      %v1412 = vrot.slane %v284, 1
      %v1413 = vrot.slane %v285, 1
      %v1414 = vsel %vm402, %v1412, %v1413
      %v1415 = vrot.slane %v286, 1
      %v1416 = vsel %vm402, %v1413, %v1415
      %v1417 = vrot.slane %v287, 1
      %v1418 = vrot.slane %v288, 1
      %v1419 = vsel %vm402, %v1417, %v1418
      %v1420 = vrot.slane %v289, 1
      %v1421 = vsel %vm402, %v1418, %v1420
      %v1422 = vrot.slane %v290, 1
      %v1423 = vrot.slane %v291, 1
      %v1424 = vsel %vm402, %v1422, %v1423
      %v1425 = vrot.slane %v292, 1
      %v1426 = vsel %vm402, %v1423, %v1425
      %v1427 = vrot.slane %v293, 1
      %v1428 = vrot.slane %v294, 1
      %v1429 = vsel %vm402, %v1427, %v1428
      %v1430 = vrot.slane %v295, 1
      %v1431 = vsel %vm402, %v1428, %v1430
      %v1432 = vrot.slane %v296, 1
      %v1433 = vrot.slane %v297, 1
      %v1434 = vsel %vm402, %v1432, %v1433
      %v1435 = vrot.slane %v298, 1
      %v1436 = vsel %vm402, %v1433, %v1435
      %v1437 = vrot.slane %v299, 1
      %v1438 = vrot.slane %v300, 1
      %v1439 = vsel %vm402, %v1437, %v1438
      %v1440 = vrot.slane %v301, 1
      %v1441 = vsel %vm402, %v1438, %v1440
      %v1442 = vrot.slane %v302, 1
      %v1443 = vrot.slane %v303, 1
      %v1444 = vsel %vm402, %v1442, %v1443
      %v1445 = vrot.slane %v304, 1
      %v1446 = vsel %vm402, %v1443, %v1445
      %v1463 = vadd.f32 %v1305, %v1409
      %v1464 = vadd.f32 %v1310, %v1411
      %v1465 = vadd.f32 %v1315, %v1414
      %v1466 = vadd.f32 %v1320, %v1416
      %v1467 = vadd.f32 %v1325, %v1419
      %v1468 = vadd.f32 %v1330, %v1421
      %v1469 = vadd.f32 %v1335, %v1424
      %v1470 = vadd.f32 %v1340, %v1426
      %v1471 = vadd.f32 %v1345, %v1429
      %v1472 = vadd.f32 %v1350, %v1431
      %v1473 = vadd.f32 %v1355, %v1434
      %v1474 = vadd.f32 %v1360, %v1436
      %v1475 = vadd.f32 %v1365, %v1439
      %v1476 = vadd.f32 %v1370, %v1441
      %v1477 = vadd.f32 %v1375, %v1444
      %v1478 = vadd.f32 %v1380, %v1446
      %1479 = vst.msk [vmem:[%s279] sm:$0xff] %vm1185, %v1463
      %1480 = vst.msk [vmem:[%s279 + $0x8] sm:$0xff] %vm1185, %v1464
      %1481 = vst.msk [vmem:[%s279 + $0x10] sm:$0xff] %vm1185, %v1465
      %1482 = vst.msk [vmem:[%s279 + $0x18] sm:$0xff] %vm1185, %v1466
      %1483 = vst.msk [vmem:[%s279 + $0x20] sm:$0xff] %vm1185, %v1467
      %1484 = vst.msk [vmem:[%s279 + $0x28] sm:$0xff] %vm1185, %v1468
      %1485 = vst.msk [vmem:[%s279 + $0x30] sm:$0xff] %vm1185, %v1469
      %1486 = vst.msk [vmem:[%s279 + $0x38] sm:$0xff] %vm1185, %v1470
      %1487 = vst.msk [vmem:[%s279 + $0x40] sm:$0xff] %vm1185, %v1471
      %1488 = vst.msk [vmem:[%s279 + $0x48] sm:$0xff] %vm1185, %v1472
      %1489 = vst.msk [vmem:[%s279 + $0x50] sm:$0xff] %vm1185, %v1473
      %1490 = vst.msk [vmem:[%s279 + $0x58] sm:$0xff] %vm1185, %v1474
      %1491 = vst.msk [vmem:[%s279 + $0x60] sm:$0xff] %vm1185, %v1475
      %1492 = vst.msk [vmem:[%s279 + $0x68] sm:$0xff] %vm1185, %v1476
      %1493 = vst.msk [vmem:[%s279 + $0x70] sm:$0xff] %vm1185, %v1477
      %1494 = vst.msk [vmem:[%s279 + $0x78] sm:$0xff] %vm1185, %v1478
      %s1495 = smul.u32 8, %s20
      %p1496 = scmp.lt.s32.totalorder %s19, 1
      %s1497 = scalar_select %p1496, %s19, 1
      %p1498 = scmp.lt.s32.totalorder %s1495, 23
      %s1499 = scalar_select %p1498, %s1495, 23
      %s1500 = smul.addr %s1499, 2
      %s1501 = smul.addr %s1497, 48
      %s1502 = sadd.s32 %s1500, %s1501
      %s1503 = smul.addr %s1502, 8
      %s1504 = scalar_lea.vmem %s4, %s1503
      // Predicated region
      $region37: #{pdc_block_forward.1} parent=35 // pred_check
        %p1505 = pneg %p145
      $region38: #{pdc_block_forward.1} parent=35 // pred_check_branch
        %1507 = sbr.rel (%p1505) target = $region40
      $region39: #{pdc_block_forward.1} parent=35 // pred_region
        %s1508 = smul.u32 8, %s20
      $region40: #{pdc_block_forward.1} parent=35 // pred_fallthru
        _
    $region36: #{pdc_block_forward.1} parent=5 // pred_fallthru
      _
    %p1509 = scmp.le.s32.totalorder 2, %s10
    // Predicated region
    $region41: #{pdc_block_forward.1} parent=5 // pred_check
      %p1510 = pneg %p1509
    $region42: #{pdc_block_forward.1} parent=5 // pred_check_branch
      %1512 = sbr.rel (%p1510) target = $region44
    $region43: #{pdc_block_forward.1} parent=5 // pred_region
      %s1513 = ssub.s32 %s10, 2
      // Predicated region
      $region45: #{pdc_block_forward.1} parent=43 // pred_check
        %p1514 = pneg %p151
      $region46: #{pdc_block_forward.1} parent=43 // pred_check_branch
        %1516 = sbr.rel (%p1514) target = $region48
      $region47: #{pdc_block_forward.1} parent=43 // pred_region
        %s1517 = smul.u32 8, %s22
        %p1518 = scmp.lt.s32.totalorder %s21, 1
        %s1519 = scalar_select %p1518, %s21, 1
        %p1520 = scmp.lt.s32.totalorder %s1517, 23
        %s1521 = scalar_select %p1520, %s1517, 23
        %s1522 = smul.addr %s1521, 2
        %s1523 = smul.addr %s1519, 48
        %s1524 = sadd.s32 %s1522, %s1523
        %s1525 = smul.addr %s1524, 8
        %s1526 = scalar_lea.vmem %s4, %s1525
      $region48: #{pdc_block_forward.1} parent=43 // pred_fallthru
        _
    $region44: #{pdc_block_forward.1} parent=5 // pred_fallthru
      _
  $region6: #{pdc_block_forward.1} parent=0 // loop_footer
    %s14 = sadd.s32 1, %s10
  $region7: #{pdc_block_forward.1} parent=0 // loop_footer_branch
    %9 = sbr.rel target = $region3
  $region8: #{pdc_block_forward.1} parent=0 // loop_exit
    _

</llo_original>
